<compile_context>
chip_gen: v6e
topology: v6e:2x2x1
jax: 0.10.0
libtpu: 0.0.40
codegen_flags: <defaults>
</compile_context>

<pallas_src>
import math

import jax
import jax.numpy as jnp
from jax.experimental import pallas as pl
from jax.experimental.pallas import tpu as pltpu


# ---------------------------------------------------------------------------
# small helpers
# ---------------------------------------------------------------------------
def _round_up(x, m):
    return ((x + m - 1) // m) * m


def _cdiv(a, b):
    return -(-a // b)


def _activation(h, name):
    name = name.lower()
    if name == "relu":
        return jnp.maximum(h, 0.0)
    if name == "silu":
        return h * jax.nn.sigmoid(h)
    if name == "tanh":
        return jnp.tanh(h)
    raise ValueError(f"Unsupported activation: {name}")


def _elementwise_dtype():
    """bf16 elementwise math on chips with a bf16 VPU (v6e/v7x); f32 on v5e and older."""
    try:
        kind = jax.devices()[0].device_kind.lower()
    except Exception:
        return jnp.float32
    for tag in ("v2", "v3", "v4", "v5"):
        if tag in kind:
            return jnp.float32
    return jnp.bfloat16


# ---------------------------------------------------------------------------
# Kernel (specialized on a static parameter layout)
# ---------------------------------------------------------------------------
def make_policy_kernel(layout, ew_dtype):
    layers = layout["layers"]
    head = layout["head"]
    activation = layout["activation"]
    use_ln = layout["use_layer_norm"]

    def kernel(x_ref, w_ref, v_ref, out_ref):
        # x tile: [TB, obs_pad] bf16 -- feeds the MXU directly.
        h = x_ref[...]

        for lyr in layers:
            w = w_ref[lyr["w_row"]:lyr["w_row"] + lyr["in_dim"], 0:lyr["out_pad"]]  # bf16
            b = v_ref[lyr["b_row"]:lyr["b_row"] + 1, 0:lyr["out_pad"]]              # f32 [1,out]
            z = jnp.dot(h, w, preferred_element_type=jnp.float32) + b               # f32
            if use_ln:
                g = v_ref[lyr["g_row"]:lyr["g_row"] + 1, 0:lyr["out_pad"]]
                be = v_ref[lyr["beta_row"]:lyr["beta_row"] + 1, 0:lyr["out_pad"]]
                inv_d = 1.0 / float(lyr["out_dim"])
                # Padded lanes of z are exactly 0 (zero-padded W cols / bias), so the
                # mean over the padded width divided by the actual dim is exact.
                mu = jnp.sum(z, axis=-1, keepdims=True) * inv_d
                centered = z - mu
                if lyr["out_pad"] != lyr["out_dim"]:
                    # Two-pass variance: mask padded lanes (they hold -mu, not 0).
                    lane = jax.lax.broadcasted_iota(jnp.int32, (1, lyr["out_pad"]), 1)
                    diff = jnp.where(lane < lyr["out_dim"], centered, 0.0)
                else:
                    diff = centered
                var = jnp.sum(diff * diff, axis=-1, keepdims=True) * inv_d
                rstd = jax.lax.rsqrt(var + 1e-5)
                # Scale-shift in ew_dtype (bf16 on v6e/v7x, f32 on v5e).
                # gamma/beta are zero in padded lanes -> padded lanes stay 0.
                zn = (centered * rstd).astype(ew_dtype)
                zn = zn * g.astype(ew_dtype) + be.astype(ew_dtype)
            else:
                zn = z.astype(ew_dtype)
            # relu/tanh/silu all map 0 -> 0, so padded lanes stay 0 for the next layer.
            h = _activation(zn, activation).astype(jnp.bfloat16)

        wh = w_ref[head["w_row"]:head["w_row"] + head["in_dim"], 0:head["out_pad"]]
        bh = v_ref[head["b_row"]:head["b_row"] + 1, 0:head["out_pad"]]
        out_ref[...] = (jnp.dot(h, wh, preferred_element_type=jnp.float32) + bh
                        ).astype(out_ref.dtype)

    return kernel


# ---------------------------------------------------------------------------
# Parameter construction (mimics nn.Linear / nn.LayerNorm default init)
# ---------------------------------------------------------------------------
def _linear_params(key, fan_in, fan_out):
    kw, kb = jax.random.split(key)
    bound = 1.0 / math.sqrt(fan_in)
    w = jax.random.uniform(kw, (fan_in, fan_out), jnp.float32, -bound, bound)
    b = jax.random.uniform(kb, (fan_out,), jnp.float32, -bound, bound)
    return w, b


def init_policy_params(key, observation_dim, action_dim, is_continuous, network_config):
    fc = []
    in_features = observation_dim
    for fc_dim in network_config["fc_out_features"]:
        key, sub = jax.random.split(key)
        w, b = _linear_params(sub, in_features, fc_dim)
        layer = {"w": w, "b": b}
        if network_config.get("use_layer_norm"):
            layer["gamma"] = jnp.ones((fc_dim,), jnp.float32)
            layer["beta"] = jnp.zeros((fc_dim,), jnp.float32)
        fc.append(layer)
        in_features = fc_dim
    key, sub = jax.random.split(key)
    wh, bh = _linear_params(sub, in_features, action_dim)
    params = {"fc": fc, "head_w": wh, "head_b": bh}
    if is_continuous:
        params["log_std"] = jnp.zeros((1, action_dim), jnp.float32)  # action_log_std
    return params


# ---------------------------------------------------------------------------
# Pack parameters into two contiguous VMEM-friendly buffers + static layout
# ---------------------------------------------------------------------------
def pack_policy_params(params, observation_dim, action_dim, network_config):
    use_ln = bool(network_config.get("use_layer_norm"))
    fc_dims = list(network_config["fc_out_features"])

    # 16-row alignment of every weight block (bf16 sublane packing is 16 rows).
    obs_pad = _round_up(observation_dim, 16)
    out_pads = [_round_up(d, 128) for d in fc_dims]        # lane-dense hidden widths
    head_pad = _round_up(action_dim, 128)                  # lane-dense head output
    wmax = max(out_pads + [head_pad])

    layers = []
    w_blocks = []
    v_rows = []
    w_row = 0
    v_row = 0
    in_pad = obs_pad
    in_actual = observation_dim

    for l, fc_dim in enumerate(fc_dims):
        out_pad = out_pads[l]
        wp = jnp.zeros((in_pad, wmax), jnp.float32)
        wp = wp.at[:in_actual, :fc_dim].set(params["fc"][l]["w"])
        w_blocks.append(wp)
        bp = jnp.zeros((wmax,), jnp.float32).at[:fc_dim].set(params["fc"][l]["b"])
        lyr = {"w_row": w_row, "in_dim": in_pad, "out_pad": out_pad,
               "out_dim": fc_dim, "b_row": v_row}
        v_rows.append(bp)
        v_row += 1
        w_row += in_pad
        if use_ln:
            g = jnp.zeros((wmax,), jnp.float32).at[:fc_dim].set(params["fc"][l]["gamma"])
            be = jnp.zeros((wmax,), jnp.float32).at[:fc_dim].set(params["fc"][l]["beta"])
            lyr["g_row"] = v_row
            v_rows.append(g)
            v_row += 1
            lyr["beta_row"] = v_row
            v_rows.append(be)
            v_row += 1
        layers.append(lyr)
        in_pad = out_pad          # multiple of 128 -> still 16-aligned
        in_actual = fc_dim

    whp = jnp.zeros((in_pad, wmax), jnp.float32)
    whp = whp.at[:in_actual, :action_dim].set(params["head_w"])
    w_blocks.append(whp)
    bhp = jnp.zeros((wmax,), jnp.float32).at[:action_dim].set(params["head_b"])
    head = {"w_row": w_row, "in_dim": in_pad, "out_pad": head_pad,
            "out_dim": action_dim, "b_row": v_row}
    v_rows.append(bhp)
    v_row += 1
    w_row += in_pad

    w_packed = jnp.concatenate(w_blocks, axis=0).astype(jnp.bfloat16)  # [w_row, wmax]
    n_v = _round_up(v_row, 8)
    v_packed = jnp.zeros((n_v, wmax), jnp.float32)
    v_packed = v_packed.at[:v_row].set(jnp.stack(v_rows, axis=0))      # [n_v, wmax]

    layout = {
        "layers": layers, "head": head,
        "activation": network_config["activation"],
        "use_layer_norm": use_ln,
        "obs_pad": obs_pad, "obs_dim": observation_dim,
        "action_dim": action_dim, "head_pad": head_pad,
        "wmax": wmax,
    }
    return w_packed, v_packed, layout


# ---------------------------------------------------------------------------
# Wrapper around pallas_call
# ---------------------------------------------------------------------------
def policy_forward(x, w_packed, v_packed, layout, *, tile_b=2048):
    """Returns the head output [B, action_dim] in f32 (logits, or mean for continuous)."""
    B, obs_dim = x.shape
    obs_pad = layout["obs_pad"]
    head_pad = layout["head_pad"]
    action_dim = layout["action_dim"]
    wmax = layout["wmax"]

    # Batch tiling: big tiles (per-grid-step overhead ~0.35us dominates otherwise),
    # but at least 2 steps when B > 16 so v7x's two TensorCores both get work.
    tile_b = max(16, _round_up(tile_b, 16))
    n_steps = max(1, _cdiv(B, tile_b))
    if B > 16:
        n_steps = max(n_steps, 2)
    TB = _round_up(_cdiv(max(B, 1), n_steps), 16)
    Bp = _round_up(max(B, 1), TB)

    # bf16 input: the cast is required for the MXU anyway; fold the zero-pad into
    # it (single HBM pass) and skip it entirely when no padding is needed.
    x_bf = x if x.dtype == jnp.bfloat16 else x.astype(jnp.bfloat16)
    if B == Bp and obs_dim == obs_pad:
        x_p = x_bf
    else:
        x_p = jnp.zeros((Bp, obs_pad), jnp.bfloat16).at[:B, :obs_dim].set(x_bf)

    # VMEM budget derived from the actual tile / param sizes (floor 16 MiB so v5e's
    # default scoped limit is always lifted, cap 48 MiB for v7x headroom).
    param_bytes = (w_packed.size * w_packed.dtype.itemsize
                   + v_packed.size * v_packed.dtype.itemsize)
    io_bytes = 2 * TB * (obs_pad + head_pad) * 2     # double-buffered bf16 in/out tiles
    work_bytes = 6 * TB * wmax * 4                   # f32 working activations + slack
    vmem_limit = int(min(48 << 20,
                         max(16 << 20, param_bytes + io_bytes + work_bytes + (2 << 20))))

    kernel = make_policy_kernel(layout, _elementwise_dtype())

    out = pl.pallas_call(
        kernel,
        out_shape=jax.ShapeDtypeStruct((Bp, head_pad), jnp.bfloat16),  # bf16 writeback
        grid=(Bp // TB,),
        in_specs=[
            pl.BlockSpec((TB, obs_pad), lambda i: (i, 0)),        # batch-tiled input
            pl.BlockSpec(w_packed.shape, lambda i: (0, 0)),       # VMEM-resident weights
            pl.BlockSpec(v_packed.shape, lambda i: (0, 0)),       # VMEM-resident vec params
        ],
        out_specs=pl.BlockSpec((TB, head_pad), lambda i: (i, 0)), # lane-dense (128) output
        compiler_params=pltpu.CompilerParams(
            dimension_semantics=("parallel",),     # v7x: both TCs split the batch
            vmem_limit_bytes=vmem_limit,
        ),
    )(x_p, w_packed, v_packed)

    return out[:B, :action_dim].astype(jnp.float32)


def policy_distribution_params(x, params, packed, is_continuous):
    """Full forward: logits (discrete) or (mean, std) (continuous)."""
    w_packed, v_packed, layout = packed
    head = policy_forward(x, w_packed, v_packed, layout)
    if is_continuous:
        # std is batch-invariant: compute + broadcast in plain JAX (no kernel work).
        std = jnp.broadcast_to(jnp.exp(params["log_std"]), head.shape)
        return head, std
    return head


# ---------------------------------------------------------------------------
# Pure-JAX reference (bf16 matmul operands, f32 everything else)
# ---------------------------------------------------------------------------
def policy_forward_ref(x, params, network_config, is_continuous):
    use_ln = bool(network_config.get("use_layer_norm"))
    act = network_config["activation"]

    def mm(a, w):
        return jnp.dot(a.astype(jnp.bfloat16), w.astype(jnp.bfloat16),
                       preferred_element_type=jnp.float32)

    h = x
    for lyr in params["fc"]:
        h = mm(h, lyr["w"]) + lyr["b"]
        if use_ln:
            mu = jnp.mean(h, axis=-1, keepdims=True)
            var = jnp.mean((h - mu) ** 2, axis=-1, keepdims=True)
            h = (h - mu) * jax.lax.rsqrt(var + 1e-5) * lyr["gamma"] + lyr["beta"]
        h = _activation(h, act)
    head = mm(h, params["head_w"]) + params["head_b"]
    if is_continuous:
        std = jnp.broadcast_to(jnp.exp(params["log_std"]), head.shape)
        return head, std
    return head


# ---------------------------------------------------------------------------
if __name__ == "__main__":
    key = jax.random.PRNGKey(0)

    observation_dim = 8
    batch = 2
    network_config = {
        "fc_out_features": [32, 32],
        "activation": "relu",
        "use_layer_norm": True,
        "dropout_rate": 0.0,
    }

    key, kx, kp_d, kp_c = jax.random.split(key, 4)
    x = jax.random.normal(kx, (batch, observation_dim), jnp.float32)

    # Kernel runs bf16 end-to-end on the data path (and bf16 LN/activation on
    # v6e/v7x), so compare against the mostly-f32 reference at 3e-2.
    ATOL = 3e-2
    RTOL = 3e-2

    # --- discrete policy: Categorical(logits) ------------------------------
    n_actions = 4
    params_d = init_policy_params(kp_d, observation_dim, n_actions,
                                  is_continuous=False, network_config=network_config)
    packed_d = pack_policy_params(params_d, observation_dim, n_actions, network_config)
    logits = policy_distribution_params(x, params_d, packed_d, is_continuous=False)
    logits = jax.block_until_ready(logits)
    logits_ref = policy_forward_ref(x, params_d, network_config, is_continuous=False)
    assert logits.shape == (batch, n_actions)
    assert bool(jnp.all(jnp.isfinite(logits)))
    assert jnp.allclose(logits, logits_ref, atol=ATOL, rtol=RTOL), (
        f"max err {jnp.max(jnp.abs(logits - logits_ref))}")

    # --- continuous policy: Normal(mean, std) ------------------------------
    action_dim = 2
    params_c = init_policy_params(kp_c, observation_dim, action_dim,
                                  is_continuous=True, network_config=network_config)
    packed_c = pack_policy_params(params_c, observation_dim, action_dim, network_config)
    mean, std = policy_distribution_params(x, params_c, packed_c, is_continuous=True)
    mean = jax.block_until_ready(mean)
    std = jax.block_until_ready(std)
    mean_ref, std_ref = policy_forward_ref(x, params_c, network_config, is_continuous=True)
    assert mean.shape == (batch, action_dim) and std.shape == (batch, action_dim)
    assert bool(jnp.all(jnp.isfinite(mean)))
    assert jnp.allclose(mean, mean_ref, atol=ATOL, rtol=RTOL), (
        f"max err {jnp.max(jnp.abs(mean - mean_ref))}")
    assert jnp.allclose(std, std_ref, atol=1e-5, rtol=1e-5)

    print("KERNEL_OK")
</pallas_src>

<mosaic_0001>
module attributes {stable_mosaic.version = 11 : i64} {
  func.func @kernel(%arg0: i32, %arg1: memref<16x16xbf16, #tpu.memory_space<vmem>>, %arg2: memref<272x128xbf16, #tpu.memory_space<vmem>>, %arg3: memref<8x128xf32, #tpu.memory_space<vmem>>, %arg4: memref<16x128xbf16, #tpu.memory_space<vmem>>) attributes {dimension_semantics = [#tpu.dimension_semantics<parallel>], iteration_bounds = array<i64: 1>, scalar_prefetch = 0 : i64, scratch_operands = 0 : i64, tpu.core_type = #tpu.core_type<tc>, window_params = [{transform_indices = @transform_0, window_bounds = array<i64: 16, 16>}, {pipeline_mode = #tpu.pipeline_mode<synchronous>, transform_indices = @transform_1, window_bounds = array<i64: 272, 128>}, {pipeline_mode = #tpu.pipeline_mode<synchronous>, transform_indices = @transform_2, window_bounds = array<i64: 8, 128>}, {transform_indices = @transform_3, window_bounds = array<i64: 16, 128>}]} {
    %c0 = arith.constant 0 : index
    %c0_0 = arith.constant 0 : index
    %0 = vector.load %arg1[%c0, %c0_0] : memref<16x16xbf16, #tpu.memory_space<vmem>>, vector<16x16xbf16>
    %c0_1 = arith.constant 0 : index
    %c0_2 = arith.constant 0 : index
    %1 = vector.load %arg2[%c0_1, %c0_2] : memref<272x128xbf16, #tpu.memory_space<vmem>>, vector<16x128xbf16>
    %c0_3 = arith.constant 0 : index
    %c0_4 = arith.constant 0 : index
    %2 = vector.load %arg3[%c0_3, %c0_4] : memref<8x128xf32, #tpu.memory_space<vmem>>, vector<1x128xf32>
    %cst = arith.constant dense<0.000000e+00> : vector<16x128xf32>
    %3 = tpu.matmul %0, %1, %cst {dimension_numbers = #tpu.dot_dimension_numbers<[1], [0], [0], [1], [0, 0, 1, 1], [], []>} : vector<16x16xbf16>, vector<16x128xbf16>, vector<16x128xf32> -> vector<16x128xf32>
    %4 = vector.broadcast %2 : vector<1x128xf32> to vector<16x128xf32>
    %5 = arith.addf %3, %4 : vector<16x128xf32>
    %c1 = arith.constant 1 : index
    %c0_5 = arith.constant 0 : index
    %6 = vector.load %arg3[%c1, %c0_5] : memref<8x128xf32, #tpu.memory_space<vmem>>, vector<1x128xf32>
    %c2 = arith.constant 2 : index
    %c0_6 = arith.constant 0 : index
    %7 = vector.load %arg3[%c2, %c0_6] : memref<8x128xf32, #tpu.memory_space<vmem>>, vector<1x128xf32>
    %cst_7 = arith.constant dense<0.000000e+00> : vector<16xf32>
    %8 = vector.multi_reduction <add>, %5, %cst_7 [1] : vector<16x128xf32> to vector<16xf32>
    %9 = vector.shape_cast %8 : vector<16xf32> to vector<16x1xf32>
    %cst_8 = arith.constant 3.125000e-02 : f32
    %10 = vector.broadcast %cst_8 : f32 to vector<16x1xf32>
    %11 = arith.mulf %9, %10 : vector<16x1xf32>
    %12 = vector.broadcast %11 : vector<16x1xf32> to vector<16x128xf32>
    %13 = arith.subf %5, %12 : vector<16x128xf32>
    %14 = tpu.iota {dimensions = array<i32: 1>} : vector<1x128xi32>
    %c32_i32 = arith.constant 32 : i32
    %15 = vector.broadcast %c32_i32 : i32 to vector<1x128xi32>
    %16 = arith.cmpi slt, %14, %15 : vector<1x128xi32>
    %cst_9 = arith.constant 0.000000e+00 : f32
    %17 = vector.shape_cast %16 : vector<1x128xi1> to vector<1x128xi1>
    %18 = vector.broadcast %17 : vector<1x128xi1> to vector<16x128xi1>
    %19 = vector.broadcast %cst_9 : f32 to vector<16x128xf32>
    %20 = arith.select %18, %13, %19 : vector<16x128xi1>, vector<16x128xf32>
    %21 = arith.mulf %20, %20 : vector<16x128xf32>
    %cst_10 = arith.constant dense<0.000000e+00> : vector<16xf32>
    %22 = vector.multi_reduction <add>, %21, %cst_10 [1] : vector<16x128xf32> to vector<16xf32>
    %23 = vector.shape_cast %22 : vector<16xf32> to vector<16x1xf32>
    %cst_11 = arith.constant 3.125000e-02 : f32
    %24 = vector.broadcast %cst_11 : f32 to vector<16x1xf32>
    %25 = arith.mulf %23, %24 : vector<16x1xf32>
    %cst_12 = arith.constant 9.99999974E-6 : f32
    %26 = vector.broadcast %cst_12 : f32 to vector<16x1xf32>
    %27 = arith.addf %25, %26 : vector<16x1xf32>
    %28 = math.rsqrt %27 : vector<16x1xf32>
    %29 = vector.broadcast %28 : vector<16x1xf32> to vector<16x128xf32>
    %30 = arith.mulf %13, %29 : vector<16x128xf32>
    %31 = arith.truncf %30 : vector<16x128xf32> to vector<16x128xbf16>
    %32 = arith.truncf %6 : vector<1x128xf32> to vector<1x128xbf16>
    %33 = vector.broadcast %32 : vector<1x128xbf16> to vector<16x128xbf16>
    %34 = arith.mulf %31, %33 : vector<16x128xbf16>
    %35 = arith.truncf %7 : vector<1x128xf32> to vector<1x128xbf16>
    %36 = vector.broadcast %35 : vector<1x128xbf16> to vector<16x128xbf16>
    %37 = arith.addf %34, %36 : vector<16x128xbf16>
    %cst_13 = arith.constant 0.000000e+00 : bf16
    %38 = vector.broadcast %cst_13 : bf16 to vector<16x128xbf16>
    %39 = arith.maximumf %37, %38 : vector<16x128xbf16>
    %c16 = arith.constant 16 : index
    %c0_14 = arith.constant 0 : index
    %40 = vector.load %arg2[%c16, %c0_14] : memref<272x128xbf16, #tpu.memory_space<vmem>>, vector<128x128xbf16>
    %c3 = arith.constant 3 : index
    %c0_15 = arith.constant 0 : index
    %41 = vector.load %arg3[%c3, %c0_15] : memref<8x128xf32, #tpu.memory_space<vmem>>, vector<1x128xf32>
    %cst_16 = arith.constant dense<0.000000e+00> : vector<16x128xf32>
    %42 = tpu.matmul %39, %40, %cst_16 {dimension_numbers = #tpu.dot_dimension_numbers<[1], [0], [0], [1], [0, 0, 1, 1], [], []>} : vector<16x128xbf16>, vector<128x128xbf16>, vector<16x128xf32> -> vector<16x128xf32>
    %43 = vector.broadcast %41 : vector<1x128xf32> to vector<16x128xf32>
    %44 = arith.addf %42, %43 : vector<16x128xf32>
    %c4 = arith.constant 4 : index
    %c0_17 = arith.constant 0 : index
    %45 = vector.load %arg3[%c4, %c0_17] : memref<8x128xf32, #tpu.memory_space<vmem>>, vector<1x128xf32>
    %c5 = arith.constant 5 : index
    %c0_18 = arith.constant 0 : index
    %46 = vector.load %arg3[%c5, %c0_18] : memref<8x128xf32, #tpu.memory_space<vmem>>, vector<1x128xf32>
    %cst_19 = arith.constant dense<0.000000e+00> : vector<16xf32>
    %47 = vector.multi_reduction <add>, %44, %cst_19 [1] : vector<16x128xf32> to vector<16xf32>
    %48 = vector.shape_cast %47 : vector<16xf32> to vector<16x1xf32>
    %cst_20 = arith.constant 3.125000e-02 : f32
    %49 = vector.broadcast %cst_20 : f32 to vector<16x1xf32>
    %50 = arith.mulf %48, %49 : vector<16x1xf32>
    %51 = vector.broadcast %50 : vector<16x1xf32> to vector<16x128xf32>
    %52 = arith.subf %44, %51 : vector<16x128xf32>
    %53 = tpu.iota {dimensions = array<i32: 1>} : vector<1x128xi32>
    %c32_i32_21 = arith.constant 32 : i32
    %54 = vector.broadcast %c32_i32_21 : i32 to vector<1x128xi32>
    %55 = arith.cmpi slt, %53, %54 : vector<1x128xi32>
    %cst_22 = arith.constant 0.000000e+00 : f32
    %56 = vector.shape_cast %55 : vector<1x128xi1> to vector<1x128xi1>
    %57 = vector.broadcast %56 : vector<1x128xi1> to vector<16x128xi1>
    %58 = vector.broadcast %cst_22 : f32 to vector<16x128xf32>
    %59 = arith.select %57, %52, %58 : vector<16x128xi1>, vector<16x128xf32>
    %60 = arith.mulf %59, %59 : vector<16x128xf32>
    %cst_23 = arith.constant dense<0.000000e+00> : vector<16xf32>
    %61 = vector.multi_reduction <add>, %60, %cst_23 [1] : vector<16x128xf32> to vector<16xf32>
    %62 = vector.shape_cast %61 : vector<16xf32> to vector<16x1xf32>
    %cst_24 = arith.constant 3.125000e-02 : f32
    %63 = vector.broadcast %cst_24 : f32 to vector<16x1xf32>
    %64 = arith.mulf %62, %63 : vector<16x1xf32>
    %cst_25 = arith.constant 9.99999974E-6 : f32
    %65 = vector.broadcast %cst_25 : f32 to vector<16x1xf32>
    %66 = arith.addf %64, %65 : vector<16x1xf32>
    %67 = math.rsqrt %66 : vector<16x1xf32>
    %68 = vector.broadcast %67 : vector<16x1xf32> to vector<16x128xf32>
    %69 = arith.mulf %52, %68 : vector<16x128xf32>
    %70 = arith.truncf %69 : vector<16x128xf32> to vector<16x128xbf16>
    %71 = arith.truncf %45 : vector<1x128xf32> to vector<1x128xbf16>
    %72 = vector.broadcast %71 : vector<1x128xbf16> to vector<16x128xbf16>
    %73 = arith.mulf %70, %72 : vector<16x128xbf16>
    %74 = arith.truncf %46 : vector<1x128xf32> to vector<1x128xbf16>
    %75 = vector.broadcast %74 : vector<1x128xbf16> to vector<16x128xbf16>
    %76 = arith.addf %73, %75 : vector<16x128xbf16>
    %cst_26 = arith.constant 0.000000e+00 : bf16
    %77 = vector.broadcast %cst_26 : bf16 to vector<16x128xbf16>
    %78 = arith.maximumf %76, %77 : vector<16x128xbf16>
    %c144 = arith.constant 144 : index
    %c0_27 = arith.constant 0 : index
    %79 = vector.load %arg2[%c144, %c0_27] : memref<272x128xbf16, #tpu.memory_space<vmem>>, vector<128x128xbf16>
    %c6 = arith.constant 6 : index
    %c0_28 = arith.constant 0 : index
    %80 = vector.load %arg3[%c6, %c0_28] : memref<8x128xf32, #tpu.memory_space<vmem>>, vector<1x128xf32>
    %cst_29 = arith.constant dense<0.000000e+00> : vector<16x128xf32>
    %81 = tpu.matmul %78, %79, %cst_29 {dimension_numbers = #tpu.dot_dimension_numbers<[1], [0], [0], [1], [0, 0, 1, 1], [], []>} : vector<16x128xbf16>, vector<128x128xbf16>, vector<16x128xf32> -> vector<16x128xf32>
    %82 = vector.broadcast %80 : vector<1x128xf32> to vector<16x128xf32>
    %83 = arith.addf %81, %82 : vector<16x128xf32>
    %84 = arith.truncf %83 : vector<16x128xf32> to vector<16x128xbf16>
    %c0_30 = arith.constant 0 : index
    %c0_31 = arith.constant 0 : index
    %85 = vector.load %arg4[%c0_30, %c0_31] : memref<16x128xbf16, #tpu.memory_space<vmem>>, vector<16x128xbf16>
    tpu.vector_store %arg4[%c0_30, %c0_31], %84 {strides = array<i32>} : memref<16x128xbf16, #tpu.memory_space<vmem>>, vector<16x128xbf16>,
    return
  }
  func.func @transform_0(%arg0: i32) -> (i32, i32) {
    %c0_i32 = arith.constant 0 : i32
    %c0_i32_0 = arith.constant 0 : i32
    return %arg0, %c0_i32 : i32, i32
  }
  func.func @transform_1(%arg0: i32) -> (i32, i32) {
    %c0_i32 = arith.constant 0 : i32
    %c0_i32_0 = arith.constant 0 : i32
    %c0_i32_1 = arith.constant 0 : i32
    return %c0_i32, %c0_i32_0 : i32, i32
  }
  func.func @transform_2(%arg0: i32) -> (i32, i32) {
    %c0_i32 = arith.constant 0 : i32
    %c0_i32_0 = arith.constant 0 : i32
    %c0_i32_1 = arith.constant 0 : i32
    return %c0_i32, %c0_i32_0 : i32, i32
  }
  func.func @transform_3(%arg0: i32) -> (i32, i32) {
    %c0_i32 = arith.constant 0 : i32
    %c0_i32_0 = arith.constant 0 : i32
    return %arg0, %c0_i32 : i32, i32
  }
}

</mosaic_0001>

<llo_original>
// kernel: tpu_custom_call.1
$region0: #{tpu_custom_call.1}
  #allocation0 [shape = 'u32[]', space=smem, size = 0x4, offset = 0x4, fixed_abs, tag = 'smem constant byte address 0x4 - core index']
  #allocation1 [shape = 'u32[144,128]{1,0:T(1,128)}', space=vmem, size = 0x12000, scoped, tag = 'internal scratch']
  %s0 = inlined_call_operand.hbm [shape: bf16[16,16], index: 0, kind: input, shape index: {}]
  %s1 = inlined_call_operand.hbm [shape: bf16[272,128], index: 1, kind: input, shape index: {}]
  %s2 = inlined_call_operand.hbm [shape: f32[8,128], index: 2, kind: input, shape index: {}]
  %s3 = inlined_call_operand.hbm [shape: bf16[16,128], index: 3, kind: output, shape index: {}]
  %s4 = sld [smem:[#allocation0]]
  $region34: #{tpu_custom_call.1} parent=0
    _
  %s6 = ssub.s32 1, %s4
  %s7 = scalar_select 0, %s6, %s4
  $region1: #{tpu_custom_call.1} parent=0
    #allocation2 [shape = 'u8[4096]{0}', space=vmem, size = 0x1000, scoped, tag = 'input window, operand 0, single buffered']
    #allocation3 [shape = 's32[1]{0}', space=sflag, size = 0x4, scoped, tag = 'scoped memory for tpu_custom_call.1']
    #allocation4 [shape = 's32[1]{0}', space=sflag, size = 0x4, scoped, tag = 'scoped memory for tpu_custom_call.1']
    #allocation5 [shape = 'u8[69632]{0}', space=vmem, size = 0x11000, scoped, tag = 'input window, operand 1, single buffered']
    #allocation6 [shape = 's32[1]{0}', space=sflag, size = 0x4, scoped, tag = 'scoped memory for tpu_custom_call.1']
    #allocation7 [shape = 'u8[4096]{0}', space=vmem, size = 0x1000, scoped, tag = 'input window, operand 2, single buffered']
    #allocation8 [shape = 'u8[4096]{0}', space=vmem, size = 0x1000, scoped, tag = 'output window, operand 0, single buffered']
    %8 = vsyncpa [#allocation3], 0
    %9 = vsyncpa [#allocation6], 0
    %10 = vsyncpa [#allocation4], 0
    // Predicated region
    $region2: #{tpu_custom_call.1} parent=1 // pred_check
      _
    $region3: #{tpu_custom_call.1} parent=1 // pred_check_branch
      %12 = sbr.rel (0) target = $region5
    $region4: #{tpu_custom_call.1} parent=1 // pred_region
      %s14 = ssub.s32 128, 128
      %15 = vsyncadd [#allocation3], %s14
      %s16 = sshll.u32 [#allocation2], 4
      %s17 = int_to_ptr.vmem [resolvable:$true] %s16
      %22 = dma.hbm_to_vmem [thread:$0]  %s0, 128, %s17, [#allocation3], 64, 64, 4
    $region5: #{tpu_custom_call.1} parent=1 // pred_fallthru
      _
    // Predicated region
    $region6: #{tpu_custom_call.1} parent=1 // pred_check
      _
    $region7: #{tpu_custom_call.1} parent=1 // pred_check_branch
      %24 = sbr.rel (0) target = $region9
    $region8: #{tpu_custom_call.1} parent=1 // pred_region
      %s26 = ssub.s32 2176, 2176
      %27 = vsyncadd [#allocation6], %s26
      %s28 = sshll.u32 [#allocation5], 4
      %s29 = int_to_ptr.vmem [resolvable:$true] %s28
      %34 = dma.hbm_to_vmem [thread:$0]  %s1, 2176, %s29, [#allocation6], 64, 64, 4
    $region9: #{tpu_custom_call.1} parent=1 // pred_fallthru
      _
    // Predicated region
    $region10: #{tpu_custom_call.1} parent=1 // pred_check
      _
    $region11: #{tpu_custom_call.1} parent=1 // pred_check_branch
      %36 = sbr.rel (0) target = $region13
    $region12: #{tpu_custom_call.1} parent=1 // pred_region
      %s38 = ssub.s32 128, 128
      %39 = vsyncadd [#allocation6], %s38
      %s41 = sshll.u32 [#allocation7], 4
      %s42 = int_to_ptr.vmem [resolvable:$true] %s41
      %44 = dma.hbm_to_vmem [thread:$0]  %s2, 128, %s42, [#allocation6]
    $region13: #{tpu_custom_call.1} parent=1 // pred_fallthru
      _
    // Predicated region
    $region14: #{tpu_custom_call.1} parent=1 // pred_check
      _
    $region15: #{tpu_custom_call.1} parent=1 // pred_check_branch
      %46 = sbr.rel (0) target = $region17
    $region16: #{tpu_custom_call.1} parent=1 // pred_region
      %47 = dma.done [#allocation3], 128
    $region17: #{tpu_custom_call.1} parent=1 // pred_fallthru
      _
    // Predicated region
    $region18: #{tpu_custom_call.1} parent=1 // pred_check
      _
    $region19: #{tpu_custom_call.1} parent=1 // pred_check_branch
      %49 = sbr.rel (0) target = $region21
    $region20: #{tpu_custom_call.1} parent=1 // pred_region
      %50 = dma.done [#allocation6], 2176
    $region21: #{tpu_custom_call.1} parent=1 // pred_fallthru
      _
    // Predicated region
    $region22: #{tpu_custom_call.1} parent=1 // pred_check
      _
    $region23: #{tpu_custom_call.1} parent=1 // pred_check_branch
      %52 = sbr.rel (0) target = $region25
    $region24: #{tpu_custom_call.1} parent=1 // pred_region
      %53 = dma.done [#allocation6], 128
    $region25: #{tpu_custom_call.1} parent=1 // pred_fallthru
      _
    %v55 = vld [vmem:[#allocation2] sm:$0xf]
    %v56 = vld [vmem:[#allocation2 + $0x4] sm:$0xf]
    %v57 = vld [vmem:[#allocation5] sm:$0xf]
    %v58 = vld [vmem:[#allocation5 + $0x4] sm:$0xf]
    %v59 = vld [vmem:[#allocation7] sm:$0x1]
    %v60 = vlaneseq
    %v61 = vshrl.u32 %v60, 7
    %v62 = vsub.s32 0, %v61
    %v63 = vrot.slane %v59, %v62
    %v66 = vunpack.c.l.b16 %v55
    %v67 = vunpack.c.l.b16 %v56
    %v68 = vpack.c.b16 %v67, %v66
    %v71 = vunpack.c.l.b16 %v57
    %v72 = vunpack.c.l.b16 %v58
    %v73 = vpack.c.b16 %v72, %v71
    %vm75 = vcmask 130048
    %v77 = vsel %vm75, %v68, 0
    %79 = vmatprep.subr.bf16.mxu0 0
    %80 = vmatpush1.bf16.msra.mxu0 0
    %81 = vmatprep.subr.bf16.mxu0 0
    %82 = vmatpush1.bf16.msra.mxu0 0
    %83 = vmatprep.subr.bf16.mxu0 0
    %84 = vmatpush1.bf16.msra.mxu0 0
    %85 = vmatprep.subr.bf16.mxu0 0
    %86 = vmatpush1.bf16.msra.mxu0 0
    %87 = vmatprep.subr.bf16.mxu0 0
    %88 = vmatpush1.bf16.msra.mxu0 0
    %89 = vmatprep.subr.bf16.mxu0 0
    %90 = vmatpush1.bf16.msra.mxu0 0
    %91 = vmatprep.subr.bf16.mxu0 0
    %92 = vmatpush1.bf16.msra.mxu0 0
    %93 = vmatprep.subr.bf16.mxu0 0
    %94 = vmatpush1.bf16.msra.mxu0 %v73
    %95 = vmatprep.subr.bf16.mxu0 0
    %96 = vmatpush2.bf16.msra.mxu0 0
    %97 = vmatprep.subr.bf16.mxu0 0
    %98 = vmatpush2.bf16.msra.mxu0 0
    %99 = vmatprep.subr.bf16.mxu0 0
    %100 = vmatpush2.bf16.msra.mxu0 0
    %101 = vmatprep.subr.bf16.mxu0 0
    %102 = vmatpush2.bf16.msra.mxu0 0
    %103 = vmatprep.subr.bf16.mxu0 0
    %104 = vmatpush2.bf16.msra.mxu0 0
    %105 = vmatprep.subr.bf16.mxu0 0
    %106 = vmatpush2.bf16.msra.mxu0 0
    %107 = vmatprep.subr.bf16.mxu0 0
    %108 = vmatpush2.bf16.msra.mxu0 0
    %109 = vmatprep.subr.bf16.mxu0 0
    %110 = vmatpush2.bf16.msra.mxu0 0
    %111 = vmatprep.mubr.bf16.mxu0 0
    %112 = vmatmul.mubr.bf16.gmra.mxu0 %v77
    %v113 = vpop.f32.mrf.mxu0
    %v114 = vadd.f32 %v63, %v113
    %v115 = vpop.f32.mrf.mxu0
    %v116 = vpop.f32.mrf.mxu0
    %v117 = vadd.f32 %v63, %v116
    %v118 = vpop.f32.mrf.mxu0
    %119 = vdwg.mxu0
    %v120 = vld [vmem:[#allocation7 + $0x1] sm:$0x1]
    %v121 = vld [vmem:[#allocation7 + $0x2] sm:$0x1]
    %122 = vadd.xlane.f32.xlu0 %v114
    %v123 = vpop.xlane.xlu0 %122
    %124 = vadd.xlane.f32.xlu0 %v117
    %v125 = vpop.xlane.xlu0 %124
    %v126 = vmul.f32 %v123, 0.03125
    %v127 = vmul.f32 %v125, 0.03125
    %v128 = vsub.f32 %v114, %v126
    %v129 = vsub.f32 %v117, %v127
    %v130 = vlaneseq
    %v131 = vand.u32 %v130, 127
    %vm132 = vcmp.lt.s32.totalorder %v131, 32
    %v133 = vsel %vm132, 1, 0
    %vm134 = vcmp.eq.s32.totalorder %v133, 1
    %v135 = vsel %vm134, %v128, 0.0
    %v136 = vsel %vm134, %v129, 0.0
    %v137 = vmul.f32 %v135, %v135
    %v138 = vmul.f32 %v136, %v136
    %139 = vadd.xlane.f32.xlu0 %v137
    %v140 = vpop.xlane.xlu0 %139
    %141 = vadd.xlane.f32.xlu0 %v138
    %v142 = vpop.xlane.xlu0 %141
    %v143 = vmul.f32 %v140, 0.03125
    %v144 = vmul.f32 %v142, 0.03125
    %v145 = vadd.f32 %v143, 1e-05
    %v146 = vadd.f32 %v144, 1e-05
    %v147 = vrsqrt.pop %v145
    %v148 = vrsqrt.pop %v146
    %v149 = vmul.f32 %v128, %v147
    %v150 = vmul.f32 %v129, %v148
    %v151 = vpack.c.bf16 %v150, %v149
    %v152 = vpack.c.bf16 %v120, %v120
    %v154 = vpack.i.b16 %v152, %v152
    %v156 = vlaneseq
    %v157 = vshrl.u32 %v156, 7
    %v158 = vsub.s32 0, %v157
    %v159 = vrot.slane %v154, %v158
    %v160 = vmul.bf16 %v151, %v159
    %v161 = vpack.c.bf16 %v121, %v121
    %v163 = vpack.i.b16 %v161, %v161
    %v165 = vlaneseq
    %v166 = vshrl.u32 %v165, 7
    %v167 = vsub.s32 0, %v166
    %v168 = vrot.slane %v163, %v167
    %v169 = vadd.bf16 %v160, %v168
    %v170 = vmax.bf16 %v169, 0
    %v171 = vld [vmem:[#allocation5 + $0x8] sm:$0xf]
    %v172 = vld [vmem:[#allocation5 + $0xc] sm:$0xf]
    %v173 = vld [vmem:[#allocation5 + $0x10] sm:$0xf]
    %v174 = vld [vmem:[#allocation5 + $0x14] sm:$0xf]
    %v175 = vld [vmem:[#allocation5 + $0x18] sm:$0xf]
    %v176 = vld [vmem:[#allocation5 + $0x1c] sm:$0xf]
    %v177 = vld [vmem:[#allocation5 + $0x20] sm:$0xf]
    %v178 = vld [vmem:[#allocation5 + $0x24] sm:$0xf]
    %v179 = vld [vmem:[#allocation5 + $0x28] sm:$0xf]
    %v180 = vld [vmem:[#allocation5 + $0x2c] sm:$0xf]
    %v181 = vld [vmem:[#allocation5 + $0x30] sm:$0xf]
    %v182 = vld [vmem:[#allocation5 + $0x34] sm:$0xf]
    %v183 = vld [vmem:[#allocation5 + $0x38] sm:$0xf]
    %v184 = vld [vmem:[#allocation5 + $0x3c] sm:$0xf]
    %v185 = vld [vmem:[#allocation5 + $0x40] sm:$0xf]
    %v186 = vld [vmem:[#allocation5 + $0x44] sm:$0xf]
    %v187 = vld [vmem:[#allocation7 + $0x3] sm:$0x1]
    %v188 = vlaneseq
    %v189 = vshrl.u32 %v188, 7
    %v190 = vsub.s32 0, %v189
    %v191 = vrot.slane %v187, %v190
    %v208 = vunpack.c.l.b16 %v171
    %v209 = vunpack.c.l.b16 %v172
    %v210 = vunpack.c.l.b16 %v173
    %v211 = vunpack.c.l.b16 %v174
    %v212 = vunpack.c.l.b16 %v175
    %v213 = vunpack.c.l.b16 %v176
    %v214 = vunpack.c.l.b16 %v177
    %v215 = vunpack.c.l.b16 %v178
    %v216 = vunpack.c.l.b16 %v179
    %v217 = vunpack.c.l.b16 %v180
    %v218 = vunpack.c.l.b16 %v181
    %v219 = vunpack.c.l.b16 %v182
    %v220 = vunpack.c.l.b16 %v183
    %v221 = vunpack.c.l.b16 %v184
    %v222 = vunpack.c.l.b16 %v185
    %v223 = vunpack.c.l.b16 %v186
    %v224 = vpack.c.b16 %v209, %v208
    %v225 = vpack.c.b16 %v211, %v210
    %v226 = vpack.c.b16 %v213, %v212
    %v227 = vpack.c.b16 %v215, %v214
    %v228 = vpack.c.b16 %v217, %v216
    %v229 = vpack.c.b16 %v219, %v218
    %v230 = vpack.c.b16 %v221, %v220
    %v231 = vpack.c.b16 %v223, %v222
    %240 = vmatprep.subr.bf16.mxu0 0
    %241 = vmatpush1.bf16.msra.mxu0 %v231
    %242 = vmatprep.subr.bf16.mxu0 0
    %243 = vmatpush1.bf16.msra.mxu0 %v230
    %244 = vmatprep.subr.bf16.mxu0 0
    %245 = vmatpush1.bf16.msra.mxu0 %v229
    %246 = vmatprep.subr.bf16.mxu0 0
    %247 = vmatpush1.bf16.msra.mxu0 %v228
    %248 = vmatprep.subr.bf16.mxu0 0
    %249 = vmatpush1.bf16.msra.mxu0 %v227
    %250 = vmatprep.subr.bf16.mxu0 0
    %251 = vmatpush1.bf16.msra.mxu0 %v226
    %252 = vmatprep.subr.bf16.mxu0 0
    %253 = vmatpush1.bf16.msra.mxu0 %v225
    %254 = vmatprep.subr.bf16.mxu0 0
    %255 = vmatpush1.bf16.msra.mxu0 %v224
    %256 = vmatprep.subr.bf16.mxu0 0
    %257 = vmatpush2.bf16.msra.mxu0 0
    %258 = vmatprep.subr.bf16.mxu0 0
    %259 = vmatpush2.bf16.msra.mxu0 0
    %260 = vmatprep.subr.bf16.mxu0 0
    %261 = vmatpush2.bf16.msra.mxu0 0
    %262 = vmatprep.subr.bf16.mxu0 0
    %263 = vmatpush2.bf16.msra.mxu0 0
    %264 = vmatprep.subr.bf16.mxu0 0
    %265 = vmatpush2.bf16.msra.mxu0 0
    %266 = vmatprep.subr.bf16.mxu0 0
    %267 = vmatpush2.bf16.msra.mxu0 0
    %268 = vmatprep.subr.bf16.mxu0 0
    %269 = vmatpush2.bf16.msra.mxu0 0
    %270 = vmatprep.subr.bf16.mxu0 0
    %271 = vmatpush2.bf16.msra.mxu0 0
    %272 = vmatprep.mubr.bf16.mxu0 0
    %273 = vmatmul.mubr.bf16.gmra.mxu0 %v170
    %v274 = vpop.f32.mrf.mxu0
    %v275 = vadd.f32 %v191, %v274
    %v276 = vpop.f32.mrf.mxu0
    %v277 = vpop.f32.mrf.mxu0
    %v278 = vadd.f32 %v191, %v277
    %v279 = vpop.f32.mrf.mxu0
    %280 = vdwg.mxu0
    %v281 = vld [vmem:[#allocation7 + $0x4] sm:$0x1]
    %v282 = vld [vmem:[#allocation7 + $0x5] sm:$0x1]
    %283 = vadd.xlane.f32.xlu0 %v275
    %v284 = vpop.xlane.xlu0 %283
    %285 = vadd.xlane.f32.xlu0 %v278
    %v286 = vpop.xlane.xlu0 %285
    %v287 = vmul.f32 %v284, 0.03125
    %v288 = vmul.f32 %v286, 0.03125
    %v289 = vsub.f32 %v275, %v287
    %v290 = vsub.f32 %v278, %v288
    %v291 = vsel %vm134, %v289, 0.0
    %v292 = vsel %vm134, %v290, 0.0
    %v293 = vmul.f32 %v291, %v291
    %v294 = vmul.f32 %v292, %v292
    %295 = vadd.xlane.f32.xlu0 %v293
    %v296 = vpop.xlane.xlu0 %295
    %297 = vadd.xlane.f32.xlu0 %v294
    %v298 = vpop.xlane.xlu0 %297
    %v299 = vmul.f32 %v296, 0.03125
    %v300 = vmul.f32 %v298, 0.03125
    %v301 = vadd.f32 %v299, 1e-05
    %v302 = vadd.f32 %v300, 1e-05
    %v303 = vrsqrt.pop %v301
    %v304 = vrsqrt.pop %v302
    %v305 = vmul.f32 %v289, %v303
    %v306 = vmul.f32 %v290, %v304
    %v307 = vpack.c.bf16 %v306, %v305
    %v308 = vpack.c.bf16 %v281, %v281
    %v310 = vpack.i.b16 %v308, %v308
    %v312 = vlaneseq
    %v313 = vshrl.u32 %v312, 7
    %v314 = vsub.s32 0, %v313
    %v315 = vrot.slane %v310, %v314
    %v316 = vmul.bf16 %v307, %v315
    %v317 = vpack.c.bf16 %v282, %v282
    %v319 = vpack.i.b16 %v317, %v317
    %v321 = vlaneseq
    %v322 = vshrl.u32 %v321, 7
    %v323 = vsub.s32 0, %v322
    %v324 = vrot.slane %v319, %v323
    %v325 = vadd.bf16 %v316, %v324
    %v326 = vmax.bf16 %v325, 0
    %v327 = vld [vmem:[#allocation5 + $0x48] sm:$0xf]
    %v328 = vld [vmem:[#allocation5 + $0x4c] sm:$0xf]
    %v329 = vld [vmem:[#allocation5 + $0x50] sm:$0xf]
    %v330 = vld [vmem:[#allocation5 + $0x54] sm:$0xf]
    %v331 = vld [vmem:[#allocation5 + $0x58] sm:$0xf]
    %v332 = vld [vmem:[#allocation5 + $0x5c] sm:$0xf]
    %v333 = vld [vmem:[#allocation5 + $0x60] sm:$0xf]
    %v334 = vld [vmem:[#allocation5 + $0x64] sm:$0xf]
    %v335 = vld [vmem:[#allocation5 + $0x68] sm:$0xf]
    %v336 = vld [vmem:[#allocation5 + $0x6c] sm:$0xf]
    %v337 = vld [vmem:[#allocation5 + $0x70] sm:$0xf]
    %v338 = vld [vmem:[#allocation5 + $0x74] sm:$0xf]
    %v339 = vld [vmem:[#allocation5 + $0x78] sm:$0xf]
    %v340 = vld [vmem:[#allocation5 + $0x7c] sm:$0xf]
    %v341 = vld [vmem:[#allocation5 + $0x80] sm:$0xf]
    %v342 = vld [vmem:[#allocation5 + $0x84] sm:$0xf]
    %v343 = vld [vmem:[#allocation7 + $0x6] sm:$0x1]
    %v344 = vlaneseq
    %v345 = vshrl.u32 %v344, 7
    %v346 = vsub.s32 0, %v345
    %v347 = vrot.slane %v343, %v346
    %v364 = vunpack.c.l.b16 %v327
    %v365 = vunpack.c.l.b16 %v328
    %v366 = vunpack.c.l.b16 %v329
    %v367 = vunpack.c.l.b16 %v330
    %v368 = vunpack.c.l.b16 %v331
    %v369 = vunpack.c.l.b16 %v332
    %v370 = vunpack.c.l.b16 %v333
    %v371 = vunpack.c.l.b16 %v334
    %v372 = vunpack.c.l.b16 %v335
    %v373 = vunpack.c.l.b16 %v336
    %v374 = vunpack.c.l.b16 %v337
    %v375 = vunpack.c.l.b16 %v338
    %v376 = vunpack.c.l.b16 %v339
    %v377 = vunpack.c.l.b16 %v340
    %v378 = vunpack.c.l.b16 %v341
    %v379 = vunpack.c.l.b16 %v342
    %v380 = vpack.c.b16 %v365, %v364
    %v381 = vpack.c.b16 %v367, %v366
    %v382 = vpack.c.b16 %v369, %v368
    %v383 = vpack.c.b16 %v371, %v370
    %v384 = vpack.c.b16 %v373, %v372
    %v385 = vpack.c.b16 %v375, %v374
    %v386 = vpack.c.b16 %v377, %v376
    %v387 = vpack.c.b16 %v379, %v378
    %396 = vmatprep.subr.bf16.mxu0 0
    %397 = vmatpush1.bf16.msra.mxu0 %v387
    %398 = vmatprep.subr.bf16.mxu0 0
    %399 = vmatpush1.bf16.msra.mxu0 %v386
    %400 = vmatprep.subr.bf16.mxu0 0
    %401 = vmatpush1.bf16.msra.mxu0 %v385
    %402 = vmatprep.subr.bf16.mxu0 0
    %403 = vmatpush1.bf16.msra.mxu0 %v384
    %404 = vmatprep.subr.bf16.mxu0 0
    %405 = vmatpush1.bf16.msra.mxu0 %v383
    %406 = vmatprep.subr.bf16.mxu0 0
    %407 = vmatpush1.bf16.msra.mxu0 %v382
    %408 = vmatprep.subr.bf16.mxu0 0
    %409 = vmatpush1.bf16.msra.mxu0 %v381
    %410 = vmatprep.subr.bf16.mxu0 0
    %411 = vmatpush1.bf16.msra.mxu0 %v380
    %412 = vmatprep.subr.bf16.mxu0 0
    %413 = vmatpush2.bf16.msra.mxu0 0
    %414 = vmatprep.subr.bf16.mxu0 0
    %415 = vmatpush2.bf16.msra.mxu0 0
    %416 = vmatprep.subr.bf16.mxu0 0
    %417 = vmatpush2.bf16.msra.mxu0 0
    %418 = vmatprep.subr.bf16.mxu0 0
    %419 = vmatpush2.bf16.msra.mxu0 0
    %420 = vmatprep.subr.bf16.mxu0 0
    %421 = vmatpush2.bf16.msra.mxu0 0
    %422 = vmatprep.subr.bf16.mxu0 0
    %423 = vmatpush2.bf16.msra.mxu0 0
    %424 = vmatprep.subr.bf16.mxu0 0
    %425 = vmatpush2.bf16.msra.mxu0 0
    %426 = vmatprep.subr.bf16.mxu0 0
    %427 = vmatpush2.bf16.msra.mxu0 0
    %428 = vmatprep.mubr.bf16.mxu0 0
    %429 = vmatmul.mubr.bf16.gmra.mxu0 %v326
    %v430 = vpop.f32.mrf.mxu0
    %v431 = vadd.f32 %v347, %v430
    %v432 = vpop.f32.mrf.mxu0
    %v433 = vpop.f32.mrf.mxu0
    %v434 = vadd.f32 %v347, %v433
    %v435 = vpop.f32.mrf.mxu0
    %436 = vdwg.mxu0
    %v437 = vpack.c.bf16 %v434, %v431
    %v439 = vunpack.c.l.b16 %v437
    %v440 = vunpack.c.h.b16 %v437
    %v441 = vpack.c.b16 %v439, %v439
    %v442 = vpack.c.b16 %v440, %v440
    %445 = vst [vmem:[#allocation8] sm:$0xf] %v441
    %446 = vst [vmem:[#allocation8 + $0x4] sm:$0xf] %v442
    // Predicated region
    $region26: #{tpu_custom_call.1} parent=1 // pred_check
      _
    $region27: #{tpu_custom_call.1} parent=1 // pred_check_branch
      %448 = sbr.rel (0) target = $region29
    $region28: #{tpu_custom_call.1} parent=1 // pred_region
      %s450 = ssub.s32 128, 128
      %451 = vsyncadd [#allocation4], %s450
      %s452 = sshll.u32 [#allocation8], 4
      %s453 = int_to_ptr.vmem [resolvable:$true] %s452
      %458 = dma.vmem_to_hbm [thread:$0]  %s453, 128, %s3, [#allocation4], 64, 64, 4
    $region29: #{tpu_custom_call.1} parent=1 // pred_fallthru
      _
    // Predicated region
    $region30: #{tpu_custom_call.1} parent=1 // pred_check
      _
    $region31: #{tpu_custom_call.1} parent=1 // pred_check_branch
      %460 = sbr.rel (0) target = $region33
    $region32: #{tpu_custom_call.1} parent=1 // pred_region
      %461 = dma.done [#allocation4], 128
    $region33: #{tpu_custom_call.1} parent=1 // pred_fallthru
      _
    %462 = vsyncpa [#allocation3], 1
    %463 = vsyncpa [#allocation6], 1
    %464 = vsyncpa [#allocation4], 1

</llo_original>
